<compile_context>
chip_gen: v5e
topology: v5e:2x2
jax: 0.10.0
libtpu: 0.0.40
codegen_flags: <defaults>
</compile_context>

<pallas_src>
import jax
import jax.numpy as jnp
from jax.experimental import pallas as pl
from jax.experimental.pallas import tpu as pltpu


def _hbm_copy_kernel(x_hbm, o_hbm, sem):
    # Whole-array HBM->HBM DMA: no VMEM round-trip, no VPU load/store work.
    cp = pltpu.make_async_copy(x_hbm, o_hbm, sem)
    cp.start()
    cp.wait()


def _materialized_copy(x: jax.Array) -> jax.Array:
    """Identity copy of `x` performed entirely by the DMA engine (HBM->HBM)."""
    return pl.pallas_call(
        _hbm_copy_kernel,
        out_shape=jax.ShapeDtypeStruct(x.shape, x.dtype),
        in_specs=[pl.BlockSpec(memory_space=pl.ANY)],
        out_specs=pl.BlockSpec(memory_space=pl.ANY),
        scratch_shapes=[pltpu.SemaphoreType.DMA(())],
    )(x)


def unflatten(x: jax.Array, mode: str = "3d", *, materialize: bool = False) -> jax.Array:
    """JAX/Pallas implementation of LaCIM's UnFlatten module.

    x: (B, C) array.
    Returns (B, C, 1, 1, 1) if mode == '3d' else (B, C, 1, 1).

    Default: exact analogue of torch.Tensor.view — a zero-cost metadata
    reshape (no kernel launch, zero bytes moved).
    materialize=True: force a fresh output buffer via a single HBM->HBM DMA
    Pallas kernel (no VMEM staging).
    """
    assert x.ndim == 2, "UnFlatten expects a flattened (B, C) input"
    B, C = x.shape

    src = _materialized_copy(x) if materialize else x

    if mode == "3d":
        return src.reshape(B, C, 1, 1, 1)
    return src.reshape(B, C, 1, 1)


if __name__ == "__main__":
    key = jax.random.PRNGKey(0)

    # Small LaCIM-like latent: batch=4, channels=128.
    B, C = 4, 128
    x = jax.random.normal(key, (B, C), dtype=jnp.float32)

    # Recommended production path: pure view, no kernel, zero HBM traffic.
    out_3d_view = jax.block_until_ready(unflatten(x, mode="3d"))
    out_2d_view = jax.block_until_ready(unflatten(x, mode="2d"))

    # Pallas path exercised once: materializing HBM->HBM DMA copy.
    out_3d = jax.block_until_ready(unflatten(x, mode="3d", materialize=True))
    out_2d = jax.block_until_ready(unflatten(x, mode="2d", materialize=True))

    # Verify shapes and values against the torch .view semantics.
    assert out_3d_view.shape == (B, C, 1, 1, 1)
    assert out_2d_view.shape == (B, C, 1, 1)
    assert out_3d.shape == (B, C, 1, 1, 1)
    assert out_2d.shape == (B, C, 1, 1)
    assert jnp.array_equal(out_3d_view.reshape(B, C), x)
    assert jnp.array_equal(out_2d_view.reshape(B, C), x)
    assert jnp.array_equal(out_3d.reshape(B, C), x)
    assert jnp.array_equal(out_2d.reshape(B, C), x)

    print("KERNEL_OK")
</pallas_src>

<mosaic_0001>
module attributes {stable_mosaic.version = 11 : i64} {
  func.func @_hbm_copy_kernel(%arg0: memref<4x128xf32, #tpu.memory_space<any>>, %arg1: memref<4x128xf32, #tpu.memory_space<any>>, %arg2: memref<!tpu.dma_semaphore, #tpu.memory_space<semaphore_mem>>) attributes {dimension_semantics = [], scalar_prefetch = 0 : i64, scratch_operands = 1 : i64, tpu.core_type = #tpu.core_type<tc>} {
    tpu.enqueue_dma source(%arg0 : memref<4x128xf32, #tpu.memory_space<any>>) target(%arg1 : memref<4x128xf32, #tpu.memory_space<any>>) target_semaphore(%arg2 : memref<!tpu.dma_semaphore, #tpu.memory_space<semaphore_mem>>)
    tpu.wait_dma2 semaphore(%arg2 : memref<!tpu.dma_semaphore, #tpu.memory_space<semaphore_mem>>) src(%arg0 : memref<4x128xf32, #tpu.memory_space<any>>) dst(%arg1 : memref<4x128xf32, #tpu.memory_space<any>>)
    return
  }
}

</mosaic_0001>

<llo_original>
// kernel: tpu_custom_call.1
$region0: #{tpu_custom_call.1}
  #allocation0 [shape = 'u32[]', space=smem, size = 0x4, offset = 0x4, fixed_abs, tag = 'smem constant byte address 0x4 - core index']
  #allocation1 [shape = 'u32[72,128]{1,0:T(1,128)}', space=vmem, size = 0x9000, scoped, tag = 'internal scratch']
  #allocation2 [shape = 's32[1]{0}', space=sflag, size = 0x4, scoped, tag = 'scratch operand']
  #allocation3 [shape = 's32[]', space=sflag, size = 0x4, offset = 0, fixed_abs, tag = 'sflag constant byte address 0x0 - dummy sync flag']
  #allocation4 [shape = 'u32[0]{0}', space=smem, size = 0, offset = 0, fixed_abs, tag = 'smem constant byte address 0x0 - null']
  %s0 = inlined_call_operand.hbm [shape: f32[4,128], index: 0, kind: input, shape index: {}]
  %s1 = inlined_call_operand.hbm [shape: f32[4,128], index: 1, kind: output, shape index: {}]
  %s2 = sld [smem:[#allocation0]]
  $region2: #{tpu_custom_call.1} parent=0
    _
  %s4 = ssub.s32 1, %s2
  %s5 = scalar_select 0, %s4, %s2
  %s7 = sshll.u32 1, 14
  %s8 = sxor.u32 4294967295, %s7
  %s10 = sshll.u32 %s0, 4
  %s11 = int_to_ptr.hbm [resolvable:$true] %s10
  %s12 = sshll.u32 %s1, 4
  %s13 = int_to_ptr.hbm [resolvable:$true] %s12
  %16 = dma.general %s11, 64, %s13, [#allocation2], [#allocation3], [#allocation4], 0, 0
  %s17 = smul.u32 4, 1
  %s18 = sshll.u32 %s17, 4
  %19 = dma.done [#allocation2], %s18
  %20 = vsyncmov [#allocation2]
  %s21 = vpop.sfrf %20
  %p22 = scmp.eq.s32.totalorder %s21, 0
  %p23 = pneg %p22
  %25 = shalt.err (%p23)

</llo_original>
